<compile_context>
chip_gen: v7x
topology: tpu7x:2x2x1
jax: 0.10.0
libtpu: 0.0.40
codegen_flags: <defaults>
</compile_context>

<pallas_src>
import functools

import jax
import jax.numpy as jnp
from jax.experimental import pallas as pl
from jax.experimental.pallas import tpu as pltpu


# ------------------------------------------------------------------
# helpers
# ------------------------------------------------------------------
def _round_up(x, m):
    return ((x + m - 1) // m) * m


def _pick_tile(dim, target, quantum=128):
    """Largest tile <= target (multiple of quantum) that divides dim, else full."""
    if dim <= target:
        return dim
    t = (target // quantum) * quantum
    while t >= quantum:
        if dim % t == 0:
            return t
        t -= quantum
    return dim


# ------------------------------------------------------------------
# Kernel 1: tiled matmul with fused affine (+residual)(+ReLU) epilogue
# ------------------------------------------------------------------
def _mm_affine_kernel(*refs, relu, has_scale, has_res):
    x_ref, w_ref = refs[0], refs[1]
    pos = 2
    scale_ref = None
    if has_scale:
        scale_ref = refs[pos]
        pos += 1
    bias_ref = refs[pos]
    pos += 1
    res_ref = None
    if has_res:
        res_ref = refs[pos]
        pos += 1
    o_ref, acc_ref = refs[pos], refs[pos + 1]

    k = pl.program_id(2)

    @pl.when(k == 0)
    def _():
        acc_ref[...] = jnp.zeros_like(acc_ref)

    acc_ref[...] += jnp.dot(x_ref[...], w_ref[...],
                            preferred_element_type=jnp.float32)

    @pl.when(k == pl.num_programs(2) - 1)
    def _():
        y = acc_ref[...]
        if has_scale:
            y = y * scale_ref[...]
        y = y + bias_ref[...]
        if has_res:
            y = y + res_ref[...].astype(jnp.float32)
        if relu:
            y = jnp.maximum(y, 0.0)
        o_ref[...] = y.astype(o_ref.dtype)


def matmul_affine(x, w, bias, scale=None, residual=None, relu=False,
                  out_dtype=jnp.bfloat16, tm_target=256, tn_target=256,
                  tk_target=512):
    """y = relu?((x @ w) * scale + bias + residual).

    bf16 operands, f32 accumulation in a VMEM scratch, tiled over (M, N, K)
    with the reduction axis innermost ('arbitrary'); epilogue fused.
    """
    M, K = x.shape
    N = w.shape[1]

    tm = min(tm_target, _round_up(M, 8))
    Mp = _round_up(M, tm)
    tn = _pick_tile(N, tn_target)
    tk = _pick_tile(K, tk_target)

    x = x.astype(jnp.bfloat16)
    w = w.astype(jnp.bfloat16)
    if Mp != M:
        x = jnp.pad(x, ((0, Mp - M), (0, 0)))

    inputs = [x, w]
    in_specs = [
        pl.BlockSpec((tm, tk), lambda i, j, k: (i, k)),
        pl.BlockSpec((tk, tn), lambda i, j, k: (k, j)),
    ]
    if scale is not None:
        inputs.append(scale.astype(jnp.float32).reshape(1, N))
        in_specs.append(pl.BlockSpec((1, tn), lambda i, j, k: (0, j)))
    inputs.append(bias.astype(jnp.float32).reshape(1, N))
    in_specs.append(pl.BlockSpec((1, tn), lambda i, j, k: (0, j)))
    if residual is not None:
        r = residual.astype(jnp.bfloat16)
        if Mp != M:
            r = jnp.pad(r, ((0, Mp - M), (0, 0)))
        inputs.append(r)
        in_specs.append(pl.BlockSpec((tm, tn), lambda i, j, k: (i, j)))

    out = pl.pallas_call(
        functools.partial(_mm_affine_kernel, relu=relu,
                          has_scale=scale is not None,
                          has_res=residual is not None),
        out_shape=jax.ShapeDtypeStruct((Mp, N), out_dtype),
        grid=(Mp // tm, N // tn, K // tk),
        in_specs=in_specs,
        out_specs=pl.BlockSpec((tm, tn), lambda i, j, k: (i, j)),
        scratch_shapes=[pltpu.VMEM((tm, tn), jnp.float32)],
        compiler_params=pltpu.CompilerParams(
            dimension_semantics=("parallel", "parallel", "arbitrary")),
    )(*inputs)
    return out[:M] if Mp != M else out


# ------------------------------------------------------------------
# Kernel 2: batched (per ROI-block) matmul for separable ROIAlign
# ------------------------------------------------------------------
def _bmm_kernel(a_ref, b_ref, o_ref):
    o_ref[...] = jnp.einsum(
        "bmk,bkn->bmn",
        a_ref[...].astype(jnp.float32),
        b_ref[...].astype(jnp.float32),
        preferred_element_type=jnp.float32).astype(o_ref.dtype)


# ------------------------------------------------------------------
# Kernel 3: tiled spatial mean pool
# ------------------------------------------------------------------
def _mean_pool_kernel(x_ref, o_ref):
    o_ref[...] = jnp.mean(x_ref[...].astype(jnp.float32), axis=1)


def spatial_mean(x_nhwc, tr=8):
    R, H, W, C = x_nhwc.shape
    tr = tr if R % tr == 0 else R
    x = x_nhwc.reshape(R, H * W, C)
    return pl.pallas_call(
        _mean_pool_kernel,
        out_shape=jax.ShapeDtypeStruct((R, C), jnp.float32),
        grid=(R // tr,),
        in_specs=[pl.BlockSpec((tr, H * W, C), lambda r: (r, 0, 0))],
        out_specs=pl.BlockSpec((tr, C), lambda r: (r, 0)),
        compiler_params=pltpu.CompilerParams(dimension_semantics=("parallel",)),
    )(x)


# ------------------------------------------------------------------
# ROIAlign (aligned=True) — separable bilinear weights (coordinate glue in
# JAX), then two batched Pallas contractions: contract H with Wy, then W
# with Wx.  Never materializes the dense (P*P, H*W) interpolation matrix.
# ------------------------------------------------------------------
def roi_align(features_nhwc, boxes, batch_idx, out_size, spatial_scale,
              sampling_ratio=2, tr=8):
    N, H, W, C = features_nhwc.shape
    R = boxes.shape[0]
    P = out_size
    S = sampling_ratio

    def axis_weights(lo, hi, size):
        bin_sz = (hi - lo) / P
        p = jnp.arange(P, dtype=jnp.float32)
        s = (jnp.arange(S, dtype=jnp.float32) + 0.5) / S
        coord = lo[:, None, None] + (p[None, :, None] + s[None, None, :]) * bin_sz[:, None, None]
        valid = (coord > -1.0) & (coord < float(size))
        c = jnp.clip(coord, 0.0, float(size - 1))
        low = jnp.floor(c)
        frac = c - low
        high = jnp.minimum(low + 1.0, float(size - 1))
        low_oh = jax.nn.one_hot(low.astype(jnp.int32), size, dtype=jnp.float32)
        high_oh = jax.nn.one_hot(high.astype(jnp.int32), size, dtype=jnp.float32)
        wgt = (1.0 - frac)[..., None] * low_oh + frac[..., None] * high_oh
        wgt = wgt * valid[..., None].astype(jnp.float32)
        return wgt.sum(axis=2) / S  # (R, P, size)

    x1 = boxes[:, 0] * spatial_scale - 0.5
    y1 = boxes[:, 1] * spatial_scale - 0.5
    x2 = boxes[:, 2] * spatial_scale - 0.5
    y2 = boxes[:, 3] * spatial_scale - 0.5
    Wy = axis_weights(y1, y2, H)  # (R, P, H)
    Wx = axis_weights(x1, x2, W)  # (R, P, W)

    # Per-ROI feature gather (glue), kept bf16 to halve HBM traffic.
    feat_g = features_nhwc[batch_idx].astype(jnp.bfloat16).reshape(R, H, W * C)

    tr = tr if R % tr == 0 else R

    # Stage 1: contract H  ->  t1[r, p, (w c)]
    t1 = pl.pallas_call(
        _bmm_kernel,
        out_shape=jax.ShapeDtypeStruct((R, P, W * C), jnp.bfloat16),
        grid=(R // tr,),
        in_specs=[pl.BlockSpec((tr, P, H), lambda r: (r, 0, 0)),
                  pl.BlockSpec((tr, H, W * C), lambda r: (r, 0, 0))],
        out_specs=pl.BlockSpec((tr, P, W * C), lambda r: (r, 0, 0)),
        compiler_params=pltpu.CompilerParams(dimension_semantics=("parallel",)),
    )(Wy, feat_g)

    # Stage 2: contract W  ->  pooled[(r p), q, c]
    t1 = t1.reshape(R * P, W, C)
    Wxb = jnp.broadcast_to(Wx[:, None, :, :], (R, P, P, W)).reshape(R * P, P, W)
    trp = tr * P
    pooled = pl.pallas_call(
        _bmm_kernel,
        out_shape=jax.ShapeDtypeStruct((R * P, P, C), jnp.bfloat16),
        grid=(R * P // trp,),
        in_specs=[pl.BlockSpec((trp, P, W), lambda r: (r, 0, 0)),
                  pl.BlockSpec((trp, W, C), lambda r: (r, 0, 0))],
        out_specs=pl.BlockSpec((trp, P, C), lambda r: (r, 0, 0)),
        compiler_params=pltpu.CompilerParams(dimension_semantics=("parallel",)),
    )(Wxb, t1)
    return pooled.reshape(R, P, P, C)


# ------------------------------------------------------------------
# Res5 bottleneck blocks (convs -> fused matmul kernel)
# ------------------------------------------------------------------
def conv1x1(x, w, scale, bias, stride=1, relu=False, residual=None):
    if stride > 1:
        x = x[:, ::stride, ::stride, :]
    R, H, W, Cin = x.shape
    Cout = w.shape[1]
    res2d = residual.reshape(R * H * W, Cout) if residual is not None else None
    y = matmul_affine(x.reshape(R * H * W, Cin), w, bias, scale=scale,
                      residual=res2d, relu=relu)
    return y.reshape(R, H, W, Cout)


def conv3x3(x, w, scale, bias, relu=False):
    # stride 1, padding 1, groups = 1; im2col built in bf16 (glue).
    # TODO(synk): fold the 9 taps into the kernel's K-reduction grid axis to
    # avoid the 9x im2col activation blow-up in HBM (needs Element offsets).
    R, H, W, Cin = x.shape
    xp = jnp.pad(x, ((0, 0), (1, 1), (1, 1), (0, 0)))
    cols = [xp[:, kh:kh + H, kw:kw + W, :] for kh in range(3) for kw in range(3)]
    patches = jnp.concatenate(cols, axis=-1).reshape(R * H * W, 9 * Cin)
    Cout = w.shape[1]
    y = matmul_affine(patches, w, bias, scale=scale, relu=relu)
    return y.reshape(R, H, W, Cout)


def bottleneck_block(x, p, stride):
    # detectron2 caffe-style BottleneckBlock (stride_in_1x1=True, FrozenBN
    # folded into scale/bias).  Residual add + final ReLU fused into conv3.
    if "shortcut_w" in p:
        sc = conv1x1(x, p["shortcut_w"], p["shortcut_scale"], p["shortcut_bias"],
                     stride=stride)
    else:
        sc = x
    y = conv1x1(x, p["conv1_w"], p["conv1_scale"], p["conv1_bias"],
                stride=stride, relu=True)
    y = conv3x3(y, p["conv2_w"], p["conv2_scale"], p["conv2_bias"], relu=True)
    y = conv1x1(y, p["conv3_w"], p["conv3_scale"], p["conv3_bias"],
                relu=True, residual=sc)
    return y


# ------------------------------------------------------------------
# Parameter init (deterministic, synthetic — FrozenBN folded to scale/bias)
# ------------------------------------------------------------------
def init_params(key, in_channels, bottleneck_channels, out_channels, num_classes):
    keys = iter(jax.random.split(key, 64))

    def w(shape, scale=0.1):
        return jax.random.normal(next(keys), shape, jnp.float32) * scale

    def affine(c):
        return w((c,), 0.05) + 1.0, w((c,), 0.05)

    params = {"res5": []}
    cin = in_channels
    for _ in range(3):
        blk = {}
        if cin != out_channels:
            blk["shortcut_w"] = w((cin, out_channels))
            blk["shortcut_scale"], blk["shortcut_bias"] = affine(out_channels)
        blk["conv1_w"] = w((cin, bottleneck_channels))
        blk["conv1_scale"], blk["conv1_bias"] = affine(bottleneck_channels)
        blk["conv2_w"] = w((9 * bottleneck_channels, bottleneck_channels))
        blk["conv2_scale"], blk["conv2_bias"] = affine(bottleneck_channels)
        blk["conv3_w"] = w((bottleneck_channels, out_channels))
        blk["conv3_scale"], blk["conv3_bias"] = affine(out_channels)
        params["res5"].append(blk)
        cin = out_channels
    # FastRCNNOutputLayers (cls_agnostic_bbox_reg = False)
    params["cls_w"] = w((out_channels, num_classes + 1), 0.01)
    params["cls_b"] = jnp.zeros((num_classes + 1,), jnp.float32)
    params["bbox_w"] = w((out_channels, num_classes * 4), 0.01)
    params["bbox_b"] = jnp.zeros((num_classes * 4,), jnp.float32)
    return params


# ------------------------------------------------------------------
# Res5ROIHeads.forward (inference path)
# ------------------------------------------------------------------
def res5_roi_heads_forward(features_nchw, boxes, batch_idx, params,
                           pooler_resolution=4, feature_stride=16):
    # TODO(synk): training path (label_and_sample_proposals + FastRCNNOutputs
    # .losses) needs IoU matching / random subsampling — not implemented.
    R = boxes.shape[0]
    Rp = max(_round_up(R, 8), 8)          # pad ROIs once, slice only at the end
    if Rp != R:
        boxes = jnp.pad(boxes, ((0, Rp - R), (0, 0)))
        batch_idx = jnp.pad(batch_idx, ((0, Rp - R),))

    feats = jnp.transpose(features_nchw, (0, 2, 3, 1)).astype(jnp.bfloat16)
    x = roi_align(feats, boxes, batch_idx, pooler_resolution,
                  1.0 / feature_stride, sampling_ratio=2)      # (Rp, P, P, Cin)
    for blk, s in zip(params["res5"], [2, 1, 1]):              # res5 (3 blocks)
        x = bottleneck_block(x, blk, s)                        # (Rp, P/2, P/2, Cout)
    feature_pooled = spatial_mean(x)                           # (Rp, Cout) f32

    # Fused cls + bbox heads, lane-dense output (N padded to a multiple of 128).
    K1 = params["cls_w"].shape[1]
    K2 = params["bbox_w"].shape[1]
    Np = _round_up(K1 + K2, 128)
    w_heads = jnp.pad(jnp.concatenate([params["cls_w"], params["bbox_w"]], axis=1),
                      ((0, 0), (0, Np - K1 - K2)))
    b_heads = jnp.pad(jnp.concatenate([params["cls_b"], params["bbox_b"]], axis=0),
                      ((0, Np - K1 - K2),))
    head_out = matmul_affine(feature_pooled, w_heads, b_heads,
                             relu=False, out_dtype=jnp.float32)
    pred_class_logits = head_out[:R, :K1]
    pred_proposal_deltas = head_out[:R, K1:K1 + K2]
    # TODO(synk): FastRCNNOutputs.inference (score threshold + per-class NMS +
    # top-k) has no static-shape Pallas equivalent; return network outputs.
    return pred_class_logits, pred_proposal_deltas


if __name__ == "__main__":
    key = jax.random.PRNGKey(0)
    k_feat, k_box, k_param = jax.random.split(key, 3)

    # Small, module-consistent shapes.
    N_img, C_feat, Hf, Wf = 2, 16, 8, 8        # single "res4" feature map, NCHW
    feature_stride = 16
    num_classes = 5
    out_channels, bottleneck_channels = 32, 8  # res5: in = out//2 = C_feat
    pooler_resolution = 4
    n_props_per_img = 3
    R = N_img * n_props_per_img

    features = jax.random.normal(k_feat, (N_img, C_feat, Hf, Wf), jnp.float32)

    img_size = float(Hf * feature_stride)
    b = jax.random.uniform(k_box, (R, 4), minval=0.0, maxval=img_size - 8.0)
    x1 = jnp.minimum(b[:, 0], b[:, 2]); x2 = jnp.maximum(b[:, 0], b[:, 2]) + 6.0
    y1 = jnp.minimum(b[:, 1], b[:, 3]); y2 = jnp.maximum(b[:, 1], b[:, 3]) + 6.0
    proposal_boxes = jnp.stack([x1, y1, x2, y2], axis=1)       # (R, 4) xyxy
    batch_idx = jnp.repeat(jnp.arange(N_img, dtype=jnp.int32), n_props_per_img)

    params = init_params(k_param, C_feat, bottleneck_channels, out_channels,
                         num_classes)

    cls_logits, bbox_deltas = res5_roi_heads_forward(
        features, proposal_boxes, batch_idx, params,
        pooler_resolution=pooler_resolution, feature_stride=feature_stride)
    jax.block_until_ready((cls_logits, bbox_deltas))

    assert cls_logits.shape == (R, num_classes + 1)
    assert bbox_deltas.shape == (R, num_classes * 4)
    assert bool(jnp.all(jnp.isfinite(cls_logits))) and bool(jnp.all(jnp.isfinite(bbox_deltas)))
    print("KERNEL_OK")
</pallas_src>

<mosaic_0001>
module attributes {stable_mosaic.version = 11 : i64} {
  func.func @_bmm_kernel(%arg0: i32, %arg1: memref<8x4x8xf32, #tpu.memory_space<vmem>>, %arg2: memref<8x8x128xbf16, #tpu.memory_space<vmem>>, %arg3: memref<8x4x128xbf16, #tpu.memory_space<vmem>>) attributes {dimension_semantics = [#tpu.dimension_semantics<parallel>], iteration_bounds = array<i64: 1>, scalar_prefetch = 0 : i64, scratch_operands = 0 : i64, tpu.core_type = #tpu.core_type<tc>, window_params = [{transform_indices = @transform_0, window_bounds = array<i64: 8, 4, 8>}, {transform_indices = @transform_1, window_bounds = array<i64: 8, 8, 128>}, {transform_indices = @transform_2, window_bounds = array<i64: 8, 4, 128>}]} {
    %c0 = arith.constant 0 : index
    %c0_0 = arith.constant 0 : index
    %c0_1 = arith.constant 0 : index
    %0 = vector.load %arg1[%c0, %c0_0, %c0_1] : memref<8x4x8xf32, #tpu.memory_space<vmem>>, vector<8x4x8xf32>
    %c0_2 = arith.constant 0 : index
    %c0_3 = arith.constant 0 : index
    %c0_4 = arith.constant 0 : index
    %1 = vector.load %arg2[%c0_2, %c0_3, %c0_4] : memref<8x8x128xbf16, #tpu.memory_space<vmem>>, vector<8x8x128xbf16>
    %2 = arith.extf %1 : vector<8x8x128xbf16> to vector<8x8x128xf32>
    "tpu.trace_start"() <{level = 10 : i32, message = "bmk,bkn->bmn"}> : () -> ()
    %cst = arith.constant dense<0.000000e+00> : vector<8x4x128xf32>
    %3 = tpu.matmul %0, %2, %cst {dimension_numbers = #tpu.dot_dimension_numbers<[2], [1], [1], [2], [0, 0, 0, 1, 1, 2], [0], [0]>} : vector<8x4x8xf32>, vector<8x8x128xf32>, vector<8x4x128xf32> -> vector<8x4x128xf32>
    "tpu.trace_stop"() : () -> ()
    %4 = arith.truncf %3 : vector<8x4x128xf32> to vector<8x4x128xbf16>
    %c0_5 = arith.constant 0 : index
    %c0_6 = arith.constant 0 : index
    %c0_7 = arith.constant 0 : index
    %5 = vector.load %arg3[%c0_5, %c0_6, %c0_7] : memref<8x4x128xbf16, #tpu.memory_space<vmem>>, vector<8x4x128xbf16>
    tpu.vector_store %arg3[%c0_5, %c0_6, %c0_7], %4 {strides = array<i32>} : memref<8x4x128xbf16, #tpu.memory_space<vmem>>, vector<8x4x128xbf16>,
    return
  }
  func.func @transform_0(%arg0: i32) -> (i32, i32, i32) {
    %c0_i32 = arith.constant 0 : i32
    %c0_i32_0 = arith.constant 0 : i32
    %c0_i32_1 = arith.constant 0 : i32
    return %arg0, %c0_i32, %c0_i32_0 : i32, i32, i32
  }
  func.func @transform_1(%arg0: i32) -> (i32, i32, i32) {
    %c0_i32 = arith.constant 0 : i32
    %c0_i32_0 = arith.constant 0 : i32
    %c0_i32_1 = arith.constant 0 : i32
    return %arg0, %c0_i32, %c0_i32_0 : i32, i32, i32
  }
  func.func @transform_2(%arg0: i32) -> (i32, i32, i32) {
    %c0_i32 = arith.constant 0 : i32
    %c0_i32_0 = arith.constant 0 : i32
    %c0_i32_1 = arith.constant 0 : i32
    return %arg0, %c0_i32, %c0_i32_0 : i32, i32, i32
  }
}

</mosaic_0001>

<llo_original>
// kernel: tpu_custom_call.1
$region0: #{tpu_custom_call.1}
  #allocation0 [shape = 'u32[]', space=smem, size = 0x4, offset = 0x4, fixed_abs, tag = 'smem constant byte address 0x4 - core index']
  #allocation1 [shape = 'u32[144,128]{1,0:T(1,128)}', space=vmem, size = 0x12000, scoped, tag = 'internal scratch']
  %s0 = inlined_call_operand.hbm [shape: f32[8,4,8], index: 0, kind: input, shape index: {}]
  %s1 = inlined_call_operand.hbm [shape: bf16[8,8,128], index: 1, kind: input, shape index: {}]
  %s2 = inlined_call_operand.hbm [shape: bf16[8,4,128], index: 2, kind: output, shape index: {}]
  %s3 = sld [smem:[#allocation0]]
  $region26: #{tpu_custom_call.1} parent=0
    _
  %s5 = ssub.s32 1, %s3
  %s6 = scalar_select 0, %s5, %s3
  $region1: #{tpu_custom_call.1} parent=0
    #allocation2 [shape = 'u8[16384]{0}', space=vmem, size = 0x4000, scoped, tag = 'input window, operand 0, single buffered']
    #allocation3 [shape = 's32[1]{0}', space=sflag, size = 0x4, scoped, tag = 'scoped memory for tpu_custom_call.1']
    #allocation4 [shape = 's32[1]{0}', space=sflag, size = 0x4, scoped, tag = 'scoped memory for tpu_custom_call.1']
    #allocation5 [shape = 'u8[16384]{0}', space=vmem, size = 0x4000, scoped, tag = 'input window, operand 1, single buffered']
    #allocation6 [shape = 's32[1]{0}', space=sflag, size = 0x4, scoped, tag = 'scoped memory for tpu_custom_call.1']
    #allocation7 [shape = 'u8[8192]{0}', space=vmem, size = 0x2000, scoped, tag = 'output window, operand 0, single buffered']
    %7 = vsyncpa [#allocation3], 0
    %8 = vsyncpa [#allocation6], 0
    %9 = vsyncpa [#allocation4], 0
    // Predicated region
    $region2: #{tpu_custom_call.1} parent=1 // pred_check
      _
    $region3: #{tpu_custom_call.1} parent=1 // pred_check_branch
      %11 = sbr.rel (0) target = $region5
    $region4: #{tpu_custom_call.1} parent=1 // pred_region
      %s13 = ssub.s32 512, 512
      %14 = vsyncadd [#allocation3], %s13
      %s15 = sshll.u32 [#allocation2], 4
      %s16 = int_to_ptr.vmem [resolvable:$true] %s15
      %21 = dma.hbm_to_vmem [thread:$0]  %s0, 512, %s16, [#allocation3], 64, 64, 4
    $region5: #{tpu_custom_call.1} parent=1 // pred_fallthru
      _
    // Predicated region
    $region6: #{tpu_custom_call.1} parent=1 // pred_check
      _
    $region7: #{tpu_custom_call.1} parent=1 // pred_check_branch
      %23 = sbr.rel (0) target = $region9
    $region8: #{tpu_custom_call.1} parent=1 // pred_region
      %s25 = ssub.s32 512, 512
      %26 = vsyncadd [#allocation6], %s25
      %s27 = sshll.u32 [#allocation5], 4
      %s28 = int_to_ptr.vmem [resolvable:$true] %s27
      %33 = dma.hbm_to_vmem [thread:$0]  %s1, 512, %s28, [#allocation6], 64, 64, 4
    $region9: #{tpu_custom_call.1} parent=1 // pred_fallthru
      _
    // Predicated region
    $region10: #{tpu_custom_call.1} parent=1 // pred_check
      _
    $region11: #{tpu_custom_call.1} parent=1 // pred_check_branch
      %35 = sbr.rel (0) target = $region13
    $region12: #{tpu_custom_call.1} parent=1 // pred_region
      %36 = dma.done [#allocation3], 512
    $region13: #{tpu_custom_call.1} parent=1 // pred_fallthru
      _
    // Predicated region
    $region14: #{tpu_custom_call.1} parent=1 // pred_check
      _
    $region15: #{tpu_custom_call.1} parent=1 // pred_check_branch
      %38 = sbr.rel (0) target = $region17
    $region16: #{tpu_custom_call.1} parent=1 // pred_region
      %39 = dma.done [#allocation6], 512
    $region17: #{tpu_custom_call.1} parent=1 // pred_fallthru
      _
    %v40 = vld [vmem:[#allocation2] sm:$0xf]
    %v41 = vld [vmem:[#allocation2 + $0x4] sm:$0xf]
    %v42 = vld [vmem:[#allocation2 + $0x8] sm:$0xf]
    %v43 = vld [vmem:[#allocation2 + $0xc] sm:$0xf]
    %v44 = vld [vmem:[#allocation2 + $0x10] sm:$0xf]
    %v45 = vld [vmem:[#allocation2 + $0x14] sm:$0xf]
    %v46 = vld [vmem:[#allocation2 + $0x18] sm:$0xf]
    %v47 = vld [vmem:[#allocation2 + $0x1c] sm:$0xf]
    %v48 = vld [vmem:[#allocation5] sm:$0xf]
    %v49 = vld [vmem:[#allocation5 + $0x4] sm:$0xf]
    %v50 = vld [vmem:[#allocation5 + $0x8] sm:$0xf]
    %v51 = vld [vmem:[#allocation5 + $0xc] sm:$0xf]
    %v52 = vld [vmem:[#allocation5 + $0x10] sm:$0xf]
    %v53 = vld [vmem:[#allocation5 + $0x14] sm:$0xf]
    %v54 = vld [vmem:[#allocation5 + $0x18] sm:$0xf]
    %v55 = vld [vmem:[#allocation5 + $0x1c] sm:$0xf]
    %v56 = vunpack.c.l.bf16 %v48
    %v57 = vunpack.c.l.bf16 %v49
    %v58 = vunpack.c.l.bf16 %v50
    %v59 = vunpack.c.l.bf16 %v51
    %v60 = vunpack.c.l.bf16 %v52
    %v61 = vunpack.c.l.bf16 %v53
    %v62 = vunpack.c.l.bf16 %v54
    %v63 = vunpack.c.l.bf16 %v55
    %vm64 = vcmask 64512
    %v66 = vsel %vm64, %v40, 0
    %68 = vmatprep.subr.mxu0 0.0
    %69 = vmatpush1.msra.mxu0 %v56
    %70 = vmatprep.subr.mxu0 0.0
    %71 = vmatpush1.msra.mxu0 0.0
    %72 = vmatprep.subr.mxu0 0.0
    %73 = vmatpush1.msra.mxu0 0.0
    %74 = vmatprep.subr.mxu0 0.0
    %75 = vmatpush1.msra.mxu0 0.0
    %76 = vmatprep.subr.mxu0 0.0
    %77 = vmatpush1.msra.mxu0 0.0
    %78 = vmatprep.subr.mxu0 0.0
    %79 = vmatpush1.msra.mxu0 0.0
    %80 = vmatprep.subr.mxu0 0.0
    %81 = vmatpush1.msra.mxu0 0.0
    %82 = vmatprep.subr.mxu0 0.0
    %83 = vmatpush1.msra.mxu0 0.0
    %84 = vmatprep.subr.mxu0 0.0
    %85 = vmatpush1.msra.mxu0 0.0
    %86 = vmatprep.subr.mxu0 0.0
    %87 = vmatpush1.msra.mxu0 0.0
    %88 = vmatprep.subr.mxu0 0.0
    %89 = vmatpush1.msra.mxu0 0.0
    %90 = vmatprep.subr.mxu0 0.0
    %91 = vmatpush1.msra.mxu0 0.0
    %92 = vmatprep.subr.mxu0 0.0
    %93 = vmatpush1.msra.mxu0 0.0
    %94 = vmatprep.subr.mxu0 0.0
    %95 = vmatpush1.msra.mxu0 0.0
    %96 = vmatprep.subr.mxu0 0.0
    %97 = vmatpush1.msra.mxu0 0.0
    %98 = vmatprep.subr.mxu0 0.0
    %99 = vmatpush1.msra.mxu0 0.0
    %100 = vmatprep.subr.mxu0 0.0
    %101 = vmatpush1.msra.mxu0 0.0
    %102 = vmatprep.subr.mxu0 0.0
    %103 = vmatpush1.msra.mxu0 0.0
    %104 = vmatprep.subr.mxu0 0.0
    %105 = vmatpush1.msra.mxu0 0.0
    %106 = vmatprep.subr.mxu0 0.0
    %107 = vmatpush1.msra.mxu0 0.0
    %108 = vmatprep.subr.mxu0 0.0
    %109 = vmatpush1.msra.mxu0 0.0
    %110 = vmatprep.subr.mxu0 0.0
    %111 = vmatpush1.msra.mxu0 0.0
    %112 = vmatprep.subr.mxu0 0.0
    %113 = vmatpush1.msra.mxu0 0.0
    %114 = vmatprep.subr.mxu0 0.0
    %115 = vmatpush1.msra.mxu0 0.0
    %116 = vmatprep.subr.mxu0 0.0
    %117 = vmatpush1.msra.mxu0 0.0
    %118 = vmatprep.subr.mxu0 0.0
    %119 = vmatpush1.msra.mxu0 0.0
    %120 = vmatprep.subr.mxu0 0.0
    %121 = vmatpush1.msra.mxu0 0.0
    %122 = vmatprep.subr.mxu0 0.0
    %123 = vmatpush1.msra.mxu0 0.0
    %124 = vmatprep.subr.mxu0 0.0
    %125 = vmatpush1.msra.mxu0 0.0
    %126 = vmatprep.subr.mxu0 0.0
    %127 = vmatpush1.msra.mxu0 0.0
    %128 = vmatprep.subr.mxu0 0.0
    %129 = vmatpush1.msra.mxu0 0.0
    %130 = vmatprep.subr.mxu0 0.0
    %131 = vmatpush1.msra.mxu0 0.0
    %132 = vmatprep.mubr.f32.mxu0 0.0
    %133 = vmatmul.mubr.f32.gmra.mrb[0].mxu0 %v66
    %v134 = vpop.f32.mrb[0].mxu0
    %v135 = vadd.f32 0.0, %v134
    %v136 = vpop.f32.mrb[0].mxu0
    %137 = vdwg.mxu0
    %v139 = vsel %vm64, %v41, 0
    %141 = vmatprep.subr.mxu0 0.0
    %142 = vmatpush1.msra.mxu0 %v57
    %143 = vmatprep.subr.mxu0 0.0
    %144 = vmatpush1.msra.mxu0 0.0
    %145 = vmatprep.subr.mxu0 0.0
    %146 = vmatpush1.msra.mxu0 0.0
    %147 = vmatprep.subr.mxu0 0.0
    %148 = vmatpush1.msra.mxu0 0.0
    %149 = vmatprep.subr.mxu0 0.0
    %150 = vmatpush1.msra.mxu0 0.0
    %151 = vmatprep.subr.mxu0 0.0
    %152 = vmatpush1.msra.mxu0 0.0
    %153 = vmatprep.subr.mxu0 0.0
    %154 = vmatpush1.msra.mxu0 0.0
    %155 = vmatprep.subr.mxu0 0.0
    %156 = vmatpush1.msra.mxu0 0.0
    %157 = vmatprep.subr.mxu0 0.0
    %158 = vmatpush1.msra.mxu0 0.0
    %159 = vmatprep.subr.mxu0 0.0
    %160 = vmatpush1.msra.mxu0 0.0
    %161 = vmatprep.subr.mxu0 0.0
    %162 = vmatpush1.msra.mxu0 0.0
    %163 = vmatprep.subr.mxu0 0.0
    %164 = vmatpush1.msra.mxu0 0.0
    %165 = vmatprep.subr.mxu0 0.0
    %166 = vmatpush1.msra.mxu0 0.0
    %167 = vmatprep.subr.mxu0 0.0
    %168 = vmatpush1.msra.mxu0 0.0
    %169 = vmatprep.subr.mxu0 0.0
    %170 = vmatpush1.msra.mxu0 0.0
    %171 = vmatprep.subr.mxu0 0.0
    %172 = vmatpush1.msra.mxu0 0.0
    %173 = vmatprep.subr.mxu0 0.0
    %174 = vmatpush1.msra.mxu0 0.0
    %175 = vmatprep.subr.mxu0 0.0
    %176 = vmatpush1.msra.mxu0 0.0
    %177 = vmatprep.subr.mxu0 0.0
    %178 = vmatpush1.msra.mxu0 0.0
    %179 = vmatprep.subr.mxu0 0.0
    %180 = vmatpush1.msra.mxu0 0.0
    %181 = vmatprep.subr.mxu0 0.0
    %182 = vmatpush1.msra.mxu0 0.0
    %183 = vmatprep.subr.mxu0 0.0
    %184 = vmatpush1.msra.mxu0 0.0
    %185 = vmatprep.subr.mxu0 0.0
    %186 = vmatpush1.msra.mxu0 0.0
    %187 = vmatprep.subr.mxu0 0.0
    %188 = vmatpush1.msra.mxu0 0.0
    %189 = vmatprep.subr.mxu0 0.0
    %190 = vmatpush1.msra.mxu0 0.0
    %191 = vmatprep.subr.mxu0 0.0
    %192 = vmatpush1.msra.mxu0 0.0
    %193 = vmatprep.subr.mxu0 0.0
    %194 = vmatpush1.msra.mxu0 0.0
    %195 = vmatprep.subr.mxu0 0.0
    %196 = vmatpush1.msra.mxu0 0.0
    %197 = vmatprep.subr.mxu0 0.0
    %198 = vmatpush1.msra.mxu0 0.0
    %199 = vmatprep.subr.mxu0 0.0
    %200 = vmatpush1.msra.mxu0 0.0
    %201 = vmatprep.subr.mxu0 0.0
    %202 = vmatpush1.msra.mxu0 0.0
    %203 = vmatprep.subr.mxu0 0.0
    %204 = vmatpush1.msra.mxu0 0.0
    %205 = vmatprep.mubr.f32.mxu0 0.0
    %206 = vmatmul.mubr.f32.gmra.mrb[0].mxu0 %v139
    %v207 = vpop.f32.mrb[0].mxu0
    %v208 = vadd.f32 0.0, %v207
    %v209 = vpop.f32.mrb[0].mxu0
    %210 = vdwg.mxu0
    %v212 = vsel %vm64, %v42, 0
    %214 = vmatprep.subr.mxu0 0.0
    %215 = vmatpush1.msra.mxu0 %v58
    %216 = vmatprep.subr.mxu0 0.0
    %217 = vmatpush1.msra.mxu0 0.0
    %218 = vmatprep.subr.mxu0 0.0
    %219 = vmatpush1.msra.mxu0 0.0
    %220 = vmatprep.subr.mxu0 0.0
    %221 = vmatpush1.msra.mxu0 0.0
    %222 = vmatprep.subr.mxu0 0.0
    %223 = vmatpush1.msra.mxu0 0.0
    %224 = vmatprep.subr.mxu0 0.0
    %225 = vmatpush1.msra.mxu0 0.0
    %226 = vmatprep.subr.mxu0 0.0
    %227 = vmatpush1.msra.mxu0 0.0
    %228 = vmatprep.subr.mxu0 0.0
    %229 = vmatpush1.msra.mxu0 0.0
    %230 = vmatprep.subr.mxu0 0.0
    %231 = vmatpush1.msra.mxu0 0.0
    %232 = vmatprep.subr.mxu0 0.0
    %233 = vmatpush1.msra.mxu0 0.0
    %234 = vmatprep.subr.mxu0 0.0
    %235 = vmatpush1.msra.mxu0 0.0
    %236 = vmatprep.subr.mxu0 0.0
    %237 = vmatpush1.msra.mxu0 0.0
    %238 = vmatprep.subr.mxu0 0.0
    %239 = vmatpush1.msra.mxu0 0.0
    %240 = vmatprep.subr.mxu0 0.0
    %241 = vmatpush1.msra.mxu0 0.0
    %242 = vmatprep.subr.mxu0 0.0
    %243 = vmatpush1.msra.mxu0 0.0
    %244 = vmatprep.subr.mxu0 0.0
    %245 = vmatpush1.msra.mxu0 0.0
    %246 = vmatprep.subr.mxu0 0.0
    %247 = vmatpush1.msra.mxu0 0.0
    %248 = vmatprep.subr.mxu0 0.0
    %249 = vmatpush1.msra.mxu0 0.0
    %250 = vmatprep.subr.mxu0 0.0
    %251 = vmatpush1.msra.mxu0 0.0
    %252 = vmatprep.subr.mxu0 0.0
    %253 = vmatpush1.msra.mxu0 0.0
    %254 = vmatprep.subr.mxu0 0.0
    %255 = vmatpush1.msra.mxu0 0.0
    %256 = vmatprep.subr.mxu0 0.0
    %257 = vmatpush1.msra.mxu0 0.0
    %258 = vmatprep.subr.mxu0 0.0
    %259 = vmatpush1.msra.mxu0 0.0
    %260 = vmatprep.subr.mxu0 0.0
    %261 = vmatpush1.msra.mxu0 0.0
    %262 = vmatprep.subr.mxu0 0.0
    %263 = vmatpush1.msra.mxu0 0.0
    %264 = vmatprep.subr.mxu0 0.0
    %265 = vmatpush1.msra.mxu0 0.0
    %266 = vmatprep.subr.mxu0 0.0
    %267 = vmatpush1.msra.mxu0 0.0
    %268 = vmatprep.subr.mxu0 0.0
    %269 = vmatpush1.msra.mxu0 0.0
    %270 = vmatprep.subr.mxu0 0.0
    %271 = vmatpush1.msra.mxu0 0.0
    %272 = vmatprep.subr.mxu0 0.0
    %273 = vmatpush1.msra.mxu0 0.0
    %274 = vmatprep.subr.mxu0 0.0
    %275 = vmatpush1.msra.mxu0 0.0
    %276 = vmatprep.subr.mxu0 0.0
    %277 = vmatpush1.msra.mxu0 0.0
    %278 = vmatprep.mubr.f32.mxu0 0.0
    %279 = vmatmul.mubr.f32.gmra.mrb[0].mxu0 %v212
    %v280 = vpop.f32.mrb[0].mxu0
    %v281 = vadd.f32 0.0, %v280
    %v282 = vpop.f32.mrb[0].mxu0
    %283 = vdwg.mxu0
    %v285 = vsel %vm64, %v43, 0
    %287 = vmatprep.subr.mxu0 0.0
    %288 = vmatpush1.msra.mxu0 %v59
    %289 = vmatprep.subr.mxu0 0.0
    %290 = vmatpush1.msra.mxu0 0.0
    %291 = vmatprep.subr.mxu0 0.0
    %292 = vmatpush1.msra.mxu0 0.0
    %293 = vmatprep.subr.mxu0 0.0
    %294 = vmatpush1.msra.mxu0 0.0
    %295 = vmatprep.subr.mxu0 0.0
    %296 = vmatpush1.msra.mxu0 0.0
    %297 = vmatprep.subr.mxu0 0.0
    %298 = vmatpush1.msra.mxu0 0.0
    %299 = vmatprep.subr.mxu0 0.0
    %300 = vmatpush1.msra.mxu0 0.0
    %301 = vmatprep.subr.mxu0 0.0
    %302 = vmatpush1.msra.mxu0 0.0
    %303 = vmatprep.subr.mxu0 0.0
    %304 = vmatpush1.msra.mxu0 0.0
    %305 = vmatprep.subr.mxu0 0.0
    %306 = vmatpush1.msra.mxu0 0.0
    %307 = vmatprep.subr.mxu0 0.0
    %308 = vmatpush1.msra.mxu0 0.0
    %309 = vmatprep.subr.mxu0 0.0
    %310 = vmatpush1.msra.mxu0 0.0
    %311 = vmatprep.subr.mxu0 0.0
    %312 = vmatpush1.msra.mxu0 0.0
    %313 = vmatprep.subr.mxu0 0.0
    %314 = vmatpush1.msra.mxu0 0.0
    %315 = vmatprep.subr.mxu0 0.0
    %316 = vmatpush1.msra.mxu0 0.0
    %317 = vmatprep.subr.mxu0 0.0
    %318 = vmatpush1.msra.mxu0 0.0
    %319 = vmatprep.subr.mxu0 0.0
    %320 = vmatpush1.msra.mxu0 0.0
    %321 = vmatprep.subr.mxu0 0.0
    %322 = vmatpush1.msra.mxu0 0.0
    %323 = vmatprep.subr.mxu0 0.0
    %324 = vmatpush1.msra.mxu0 0.0
    %325 = vmatprep.subr.mxu0 0.0
    %326 = vmatpush1.msra.mxu0 0.0
    %327 = vmatprep.subr.mxu0 0.0
    %328 = vmatpush1.msra.mxu0 0.0
    %329 = vmatprep.subr.mxu0 0.0
    %330 = vmatpush1.msra.mxu0 0.0
    %331 = vmatprep.subr.mxu0 0.0
    %332 = vmatpush1.msra.mxu0 0.0
    %333 = vmatprep.subr.mxu0 0.0
    %334 = vmatpush1.msra.mxu0 0.0
    %335 = vmatprep.subr.mxu0 0.0
    %336 = vmatpush1.msra.mxu0 0.0
    %337 = vmatprep.subr.mxu0 0.0
    %338 = vmatpush1.msra.mxu0 0.0
    %339 = vmatprep.subr.mxu0 0.0
    %340 = vmatpush1.msra.mxu0 0.0
    %341 = vmatprep.subr.mxu0 0.0
    %342 = vmatpush1.msra.mxu0 0.0
    %343 = vmatprep.subr.mxu0 0.0
    %344 = vmatpush1.msra.mxu0 0.0
    %345 = vmatprep.subr.mxu0 0.0
    %346 = vmatpush1.msra.mxu0 0.0
    %347 = vmatprep.subr.mxu0 0.0
    %348 = vmatpush1.msra.mxu0 0.0
    %349 = vmatprep.subr.mxu0 0.0
    %350 = vmatpush1.msra.mxu0 0.0
    %351 = vmatprep.mubr.f32.mxu0 0.0
    %352 = vmatmul.mubr.f32.gmra.mrb[0].mxu0 %v285
    %v353 = vpop.f32.mrb[0].mxu0
    %v354 = vadd.f32 0.0, %v353
    %v355 = vpop.f32.mrb[0].mxu0
    %356 = vdwg.mxu0
    %v358 = vsel %vm64, %v44, 0
    %360 = vmatprep.subr.mxu0 0.0
    %361 = vmatpush1.msra.mxu0 %v60
    %362 = vmatprep.subr.mxu0 0.0
    %363 = vmatpush1.msra.mxu0 0.0
    %364 = vmatprep.subr.mxu0 0.0
    %365 = vmatpush1.msra.mxu0 0.0
    %366 = vmatprep.subr.mxu0 0.0
    %367 = vmatpush1.msra.mxu0 0.0
    %368 = vmatprep.subr.mxu0 0.0
    %369 = vmatpush1.msra.mxu0 0.0
    %370 = vmatprep.subr.mxu0 0.0
    %371 = vmatpush1.msra.mxu0 0.0
    %372 = vmatprep.subr.mxu0 0.0
    %373 = vmatpush1.msra.mxu0 0.0
    %374 = vmatprep.subr.mxu0 0.0
    %375 = vmatpush1.msra.mxu0 0.0
    %376 = vmatprep.subr.mxu0 0.0
    %377 = vmatpush1.msra.mxu0 0.0
    %378 = vmatprep.subr.mxu0 0.0
    %379 = vmatpush1.msra.mxu0 0.0
    %380 = vmatprep.subr.mxu0 0.0
    %381 = vmatpush1.msra.mxu0 0.0
    %382 = vmatprep.subr.mxu0 0.0
    %383 = vmatpush1.msra.mxu0 0.0
    %384 = vmatprep.subr.mxu0 0.0
    %385 = vmatpush1.msra.mxu0 0.0
    %386 = vmatprep.subr.mxu0 0.0
    %387 = vmatpush1.msra.mxu0 0.0
    %388 = vmatprep.subr.mxu0 0.0
    %389 = vmatpush1.msra.mxu0 0.0
    %390 = vmatprep.subr.mxu0 0.0
    %391 = vmatpush1.msra.mxu0 0.0
    %392 = vmatprep.subr.mxu0 0.0
    %393 = vmatpush1.msra.mxu0 0.0
    %394 = vmatprep.subr.mxu0 0.0
    %395 = vmatpush1.msra.mxu0 0.0
    %396 = vmatprep.subr.mxu0 0.0
    %397 = vmatpush1.msra.mxu0 0.0
    %398 = vmatprep.subr.mxu0 0.0
    %399 = vmatpush1.msra.mxu0 0.0
    %400 = vmatprep.subr.mxu0 0.0
    %401 = vmatpush1.msra.mxu0 0.0
    %402 = vmatprep.subr.mxu0 0.0
    %403 = vmatpush1.msra.mxu0 0.0
    %404 = vmatprep.subr.mxu0 0.0
    %405 = vmatpush1.msra.mxu0 0.0
    %406 = vmatprep.subr.mxu0 0.0
    %407 = vmatpush1.msra.mxu0 0.0
    %408 = vmatprep.subr.mxu0 0.0
    %409 = vmatpush1.msra.mxu0 0.0
    %410 = vmatprep.subr.mxu0 0.0
    %411 = vmatpush1.msra.mxu0 0.0
    %412 = vmatprep.subr.mxu0 0.0
    %413 = vmatpush1.msra.mxu0 0.0
    %414 = vmatprep.subr.mxu0 0.0
    %415 = vmatpush1.msra.mxu0 0.0
    %416 = vmatprep.subr.mxu0 0.0
    %417 = vmatpush1.msra.mxu0 0.0
    %418 = vmatprep.subr.mxu0 0.0
    %419 = vmatpush1.msra.mxu0 0.0
    %420 = vmatprep.subr.mxu0 0.0
    %421 = vmatpush1.msra.mxu0 0.0
    %422 = vmatprep.subr.mxu0 0.0
    %423 = vmatpush1.msra.mxu0 0.0
    %424 = vmatprep.mubr.f32.mxu0 0.0
    %425 = vmatmul.mubr.f32.gmra.mrb[0].mxu0 %v358
    %v426 = vpop.f32.mrb[0].mxu0
    %v427 = vadd.f32 0.0, %v426
    %v428 = vpop.f32.mrb[0].mxu0
    %429 = vdwg.mxu0
    %v431 = vsel %vm64, %v45, 0
    %433 = vmatprep.subr.mxu0 0.0
    %434 = vmatpush1.msra.mxu0 %v61
    %435 = vmatprep.subr.mxu0 0.0
    %436 = vmatpush1.msra.mxu0 0.0
    %437 = vmatprep.subr.mxu0 0.0
    %438 = vmatpush1.msra.mxu0 0.0
    %439 = vmatprep.subr.mxu0 0.0
    %440 = vmatpush1.msra.mxu0 0.0
    %441 = vmatprep.subr.mxu0 0.0
    %442 = vmatpush1.msra.mxu0 0.0
    %443 = vmatprep.subr.mxu0 0.0
    %444 = vmatpush1.msra.mxu0 0.0
    %445 = vmatprep.subr.mxu0 0.0
    %446 = vmatpush1.msra.mxu0 0.0
    %447 = vmatprep.subr.mxu0 0.0
    %448 = vmatpush1.msra.mxu0 0.0
    %449 = vmatprep.subr.mxu0 0.0
    %450 = vmatpush1.msra.mxu0 0.0
    %451 = vmatprep.subr.mxu0 0.0
    %452 = vmatpush1.msra.mxu0 0.0
    %453 = vmatprep.subr.mxu0 0.0
    %454 = vmatpush1.msra.mxu0 0.0
    %455 = vmatprep.subr.mxu0 0.0
    %456 = vmatpush1.msra.mxu0 0.0
    %457 = vmatprep.subr.mxu0 0.0
    %458 = vmatpush1.msra.mxu0 0.0
    %459 = vmatprep.subr.mxu0 0.0
    %460 = vmatpush1.msra.mxu0 0.0
    %461 = vmatprep.subr.mxu0 0.0
    %462 = vmatpush1.msra.mxu0 0.0
    %463 = vmatprep.subr.mxu0 0.0
    %464 = vmatpush1.msra.mxu0 0.0
    %465 = vmatprep.subr.mxu0 0.0
    %466 = vmatpush1.msra.mxu0 0.0
    %467 = vmatprep.subr.mxu0 0.0
    %468 = vmatpush1.msra.mxu0 0.0
    %469 = vmatprep.subr.mxu0 0.0
    %470 = vmatpush1.msra.mxu0 0.0
    %471 = vmatprep.subr.mxu0 0.0
    %472 = vmatpush1.msra.mxu0 0.0
    %473 = vmatprep.subr.mxu0 0.0
    %474 = vmatpush1.msra.mxu0 0.0
    %475 = vmatprep.subr.mxu0 0.0
    %476 = vmatpush1.msra.mxu0 0.0
    %477 = vmatprep.subr.mxu0 0.0
    %478 = vmatpush1.msra.mxu0 0.0
    %479 = vmatprep.subr.mxu0 0.0
    %480 = vmatpush1.msra.mxu0 0.0
    %481 = vmatprep.subr.mxu0 0.0
    %482 = vmatpush1.msra.mxu0 0.0
    %483 = vmatprep.subr.mxu0 0.0
    %484 = vmatpush1.msra.mxu0 0.0
    %485 = vmatprep.subr.mxu0 0.0
    %486 = vmatpush1.msra.mxu0 0.0
    %487 = vmatprep.subr.mxu0 0.0
    %488 = vmatpush1.msra.mxu0 0.0
    %489 = vmatprep.subr.mxu0 0.0
    %490 = vmatpush1.msra.mxu0 0.0
    %491 = vmatprep.subr.mxu0 0.0
    %492 = vmatpush1.msra.mxu0 0.0
    %493 = vmatprep.subr.mxu0 0.0
    %494 = vmatpush1.msra.mxu0 0.0
    %495 = vmatprep.subr.mxu0 0.0
    %496 = vmatpush1.msra.mxu0 0.0
    %497 = vmatprep.mubr.f32.mxu0 0.0
    %498 = vmatmul.mubr.f32.gmra.mrb[0].mxu0 %v431
    %v499 = vpop.f32.mrb[0].mxu0
    %v500 = vadd.f32 0.0, %v499
    %v501 = vpop.f32.mrb[0].mxu0
    %502 = vdwg.mxu0
    %v504 = vsel %vm64, %v46, 0
    %506 = vmatprep.subr.mxu0 0.0
    %507 = vmatpush1.msra.mxu0 %v62
    %508 = vmatprep.subr.mxu0 0.0
    %509 = vmatpush1.msra.mxu0 0.0
    %510 = vmatprep.subr.mxu0 0.0
    %511 = vmatpush1.msra.mxu0 0.0
    %512 = vmatprep.subr.mxu0 0.0
    %513 = vmatpush1.msra.mxu0 0.0
    %514 = vmatprep.subr.mxu0 0.0
    %515 = vmatpush1.msra.mxu0 0.0
    %516 = vmatprep.subr.mxu0 0.0
    %517 = vmatpush1.msra.mxu0 0.0
    %518 = vmatprep.subr.mxu0 0.0
    %519 = vmatpush1.msra.mxu0 0.0
    %520 = vmatprep.subr.mxu0 0.0
    %521 = vmatpush1.msra.mxu0 0.0
    %522 = vmatprep.subr.mxu0 0.0
    %523 = vmatpush1.msra.mxu0 0.0
    %524 = vmatprep.subr.mxu0 0.0
    %525 = vmatpush1.msra.mxu0 0.0
    %526 = vmatprep.subr.mxu0 0.0
    %527 = vmatpush1.msra.mxu0 0.0
    %528 = vmatprep.subr.mxu0 0.0
    %529 = vmatpush1.msra.mxu0 0.0
    %530 = vmatprep.subr.mxu0 0.0
    %531 = vmatpush1.msra.mxu0 0.0
    %532 = vmatprep.subr.mxu0 0.0
    %533 = vmatpush1.msra.mxu0 0.0
    %534 = vmatprep.subr.mxu0 0.0
    %535 = vmatpush1.msra.mxu0 0.0
    %536 = vmatprep.subr.mxu0 0.0
    %537 = vmatpush1.msra.mxu0 0.0
    %538 = vmatprep.subr.mxu0 0.0
    %539 = vmatpush1.msra.mxu0 0.0
    %540 = vmatprep.subr.mxu0 0.0
    %541 = vmatpush1.msra.mxu0 0.0
    %542 = vmatprep.subr.mxu0 0.0
    %543 = vmatpush1.msra.mxu0 0.0
    %544 = vmatprep.subr.mxu0 0.0
    %545 = vmatpush1.msra.mxu0 0.0
    %546 = vmatprep.subr.mxu0 0.0
    %547 = vmatpush1.msra.mxu0 0.0
    %548 = vmatprep.subr.mxu0 0.0
    %549 = vmatpush1.msra.mxu0 0.0
    %550 = vmatprep.subr.mxu0 0.0
    %551 = vmatpush1.msra.mxu0 0.0
    %552 = vmatprep.subr.mxu0 0.0
    %553 = vmatpush1.msra.mxu0 0.0
    %554 = vmatprep.subr.mxu0 0.0
    %555 = vmatpush1.msra.mxu0 0.0
    %556 = vmatprep.subr.mxu0 0.0
    %557 = vmatpush1.msra.mxu0 0.0
    %558 = vmatprep.subr.mxu0 0.0
    %559 = vmatpush1.msra.mxu0 0.0
    %560 = vmatprep.subr.mxu0 0.0
    %561 = vmatpush1.msra.mxu0 0.0
    %562 = vmatprep.subr.mxu0 0.0
    %563 = vmatpush1.msra.mxu0 0.0
    %564 = vmatprep.subr.mxu0 0.0
    %565 = vmatpush1.msra.mxu0 0.0
    %566 = vmatprep.subr.mxu0 0.0
    %567 = vmatpush1.msra.mxu0 0.0
    %568 = vmatprep.subr.mxu0 0.0
    %569 = vmatpush1.msra.mxu0 0.0
    %570 = vmatprep.mubr.f32.mxu0 0.0
    %571 = vmatmul.mubr.f32.gmra.mrb[0].mxu0 %v504
    %v572 = vpop.f32.mrb[0].mxu0
    %v573 = vadd.f32 0.0, %v572
    %v574 = vpop.f32.mrb[0].mxu0
    %575 = vdwg.mxu0
    %v577 = vsel %vm64, %v47, 0
    %579 = vmatprep.subr.mxu0 0.0
    %580 = vmatpush1.msra.mxu0 %v63
    %581 = vmatprep.subr.mxu0 0.0
    %582 = vmatpush1.msra.mxu0 0.0
    %583 = vmatprep.subr.mxu0 0.0
    %584 = vmatpush1.msra.mxu0 0.0
    %585 = vmatprep.subr.mxu0 0.0
    %586 = vmatpush1.msra.mxu0 0.0
    %587 = vmatprep.subr.mxu0 0.0
    %588 = vmatpush1.msra.mxu0 0.0
    %589 = vmatprep.subr.mxu0 0.0
    %590 = vmatpush1.msra.mxu0 0.0
    %591 = vmatprep.subr.mxu0 0.0
    %592 = vmatpush1.msra.mxu0 0.0
    %593 = vmatprep.subr.mxu0 0.0
    %594 = vmatpush1.msra.mxu0 0.0
    %595 = vmatprep.subr.mxu0 0.0
    %596 = vmatpush1.msra.mxu0 0.0
    %597 = vmatprep.subr.mxu0 0.0
    %598 = vmatpush1.msra.mxu0 0.0
    %599 = vmatprep.subr.mxu0 0.0
    %600 = vmatpush1.msra.mxu0 0.0
    %601 = vmatprep.subr.mxu0 0.0
    %602 = vmatpush1.msra.mxu0 0.0
    %603 = vmatprep.subr.mxu0 0.0
    %604 = vmatpush1.msra.mxu0 0.0
    %605 = vmatprep.subr.mxu0 0.0
    %606 = vmatpush1.msra.mxu0 0.0
    %607 = vmatprep.subr.mxu0 0.0
    %608 = vmatpush1.msra.mxu0 0.0
    %609 = vmatprep.subr.mxu0 0.0
    %610 = vmatpush1.msra.mxu0 0.0
    %611 = vmatprep.subr.mxu0 0.0
    %612 = vmatpush1.msra.mxu0 0.0
    %613 = vmatprep.subr.mxu0 0.0
    %614 = vmatpush1.msra.mxu0 0.0
    %615 = vmatprep.subr.mxu0 0.0
    %616 = vmatpush1.msra.mxu0 0.0
    %617 = vmatprep.subr.mxu0 0.0
    %618 = vmatpush1.msra.mxu0 0.0
    %619 = vmatprep.subr.mxu0 0.0
    %620 = vmatpush1.msra.mxu0 0.0
    %621 = vmatprep.subr.mxu0 0.0
    %622 = vmatpush1.msra.mxu0 0.0
    %623 = vmatprep.subr.mxu0 0.0
    %624 = vmatpush1.msra.mxu0 0.0
    %625 = vmatprep.subr.mxu0 0.0
    %626 = vmatpush1.msra.mxu0 0.0
    %627 = vmatprep.subr.mxu0 0.0
    %628 = vmatpush1.msra.mxu0 0.0
    %629 = vmatprep.subr.mxu0 0.0
    %630 = vmatpush1.msra.mxu0 0.0
    %631 = vmatprep.subr.mxu0 0.0
    %632 = vmatpush1.msra.mxu0 0.0
    %633 = vmatprep.subr.mxu0 0.0
    %634 = vmatpush1.msra.mxu0 0.0
    %635 = vmatprep.subr.mxu0 0.0
    %636 = vmatpush1.msra.mxu0 0.0
    %637 = vmatprep.subr.mxu0 0.0
    %638 = vmatpush1.msra.mxu0 0.0
    %639 = vmatprep.subr.mxu0 0.0
    %640 = vmatpush1.msra.mxu0 0.0
    %641 = vmatprep.subr.mxu0 0.0
    %642 = vmatpush1.msra.mxu0 0.0
    %643 = vmatprep.mubr.f32.mxu0 0.0
    %644 = vmatmul.mubr.f32.gmra.mrb[0].mxu0 %v577
    %v645 = vpop.f32.mrb[0].mxu0
    %v646 = vadd.f32 0.0, %v645
    %v647 = vpop.f32.mrb[0].mxu0
    %648 = vdwg.mxu0
    %v649 = vpack.c.bf16 %v135, %v135
    %v650 = vpack.c.bf16 %v208, %v208
    %v651 = vpack.c.bf16 %v281, %v281
    %v652 = vpack.c.bf16 %v354, %v354
    %v653 = vpack.c.bf16 %v427, %v427
    %v654 = vpack.c.bf16 %v500, %v500
    %v655 = vpack.c.bf16 %v573, %v573
    %v656 = vpack.c.bf16 %v646, %v646
    %657 = vst [vmem:[#allocation7] sm:$0x3] %v649
    %658 = vst [vmem:[#allocation7 + $0x2] sm:$0x3] %v650
    %659 = vst [vmem:[#allocation7 + $0x4] sm:$0x3] %v651
    %660 = vst [vmem:[#allocation7 + $0x6] sm:$0x3] %v652
    %661 = vst [vmem:[#allocation7 + $0x8] sm:$0x3] %v653
    %662 = vst [vmem:[#allocation7 + $0xa] sm:$0x3] %v654
    %663 = vst [vmem:[#allocation7 + $0xc] sm:$0x3] %v655
    %664 = vst [vmem:[#allocation7 + $0xe] sm:$0x3] %v656
    // Predicated region
    $region18: #{tpu_custom_call.1} parent=1 // pred_check
      _
    $region19: #{tpu_custom_call.1} parent=1 // pred_check_branch
      %666 = sbr.rel (0) target = $region21
    $region20: #{tpu_custom_call.1} parent=1 // pred_region
      %s668 = ssub.s32 256, 256
      %669 = vsyncadd [#allocation4], %s668
      %s670 = sshll.u32 [#allocation7], 4
      %s671 = int_to_ptr.vmem [resolvable:$true] %s670
      %676 = dma.vmem_to_hbm [thread:$0]  %s671, 256, %s2, [#allocation4], 32, 32, 2
    $region21: #{tpu_custom_call.1} parent=1 // pred_fallthru
      _
    // Predicated region
    $region22: #{tpu_custom_call.1} parent=1 // pred_check
      _
    $region23: #{tpu_custom_call.1} parent=1 // pred_check_branch
      %678 = sbr.rel (0) target = $region25
    $region24: #{tpu_custom_call.1} parent=1 // pred_region
      %679 = dma.done [#allocation4], 256
    $region25: #{tpu_custom_call.1} parent=1 // pred_fallthru
      _
    %680 = vsyncpa [#allocation3], 1
    %681 = vsyncpa [#allocation6], 1
    %682 = vsyncpa [#allocation4], 1

</llo_original>
